<compile_context>
chip_gen: v5e
topology: v5e:2x2
jax: 0.10.0
libtpu: 0.0.40
codegen_flags: <defaults>
</compile_context>

<pallas_src>
import jax
import jax.numpy as jnp
from jax.experimental import pallas as pl
from jax.experimental.pallas import tpu as pltpu


def _scale_kernel(w_ref, x_ref, o_ref):
    # w_ref: SMEM scalar (shape (1,)); x_ref/o_ref: lane-dense VMEM tiles.
    s = w_ref[0]                      # hoist the scalar read once per tile
    o_ref[...] = x_ref[...] * s


_LANE_CANDIDATES = (4096, 2048, 1024, 512, 256, 128)
_TARGET_TILE_BYTES = 4 * 1024 * 1024  # ~4 MiB/tile -> ~16 MiB double-buffered


def scale_forward(x, weight):
    """x: arbitrary-shaped float array (e.g. NCHW); weight: (1,) scalar param."""
    orig_shape = x.shape
    total = x.size
    itemsize = jnp.dtype(x.dtype).itemsize

    # ---- lane-dense layout: last dim a large multiple of 128 ----
    lane = None
    for cand in _LANE_CANDIDATES:
        if total % cand == 0:
            lane = cand
            break
    if lane is None:
        lane = 128
    pad = (-total) % lane

    flat = x.reshape(-1)
    if pad:
        flat = jnp.pad(flat, (0, pad))
    m = flat.size // lane
    x2d = flat.reshape(m, lane)

    # ---- row-tile size: full array if tiny, else multiple-of-8 rows ~4 MiB ----
    if m * lane * itemsize <= _TARGET_TILE_BYTES:
        tm = m
    else:
        tm = max(8, (_TARGET_TILE_BYTES // (lane * itemsize)) // 8 * 8)
        tm = min(tm, m)

    grid = (pl.cdiv(m, tm),)

    out2d = pl.pallas_call(
        _scale_kernel,
        out_shape=jax.ShapeDtypeStruct(x2d.shape, x2d.dtype),
        grid=grid,
        in_specs=[
            pl.BlockSpec(memory_space=pltpu.SMEM),          # scalar weight
            pl.BlockSpec((tm, lane), lambda i: (i, 0)),     # lane-dense tile
        ],
        out_specs=pl.BlockSpec((tm, lane), lambda i: (i, 0)),
        compiler_params=pltpu.CompilerParams(
            dimension_semantics=("parallel",),              # megacore / 2-TC split
            vmem_limit_bytes=32 * 1024 * 1024,
        ),
        cost_estimate=pl.CostEstimate(
            flops=total,
            transcendentals=0,
            bytes_accessed=2 * total * itemsize,
        ),
    )(weight, x2d)

    out_flat = out2d.reshape(-1)
    if pad:
        out_flat = out_flat[:total]
    return out_flat.reshape(orig_shape)


if __name__ == "__main__":
    key = jax.random.PRNGKey(0)

    # Deterministic parameter init, matching Scale.__init__:
    #   weight = nn.Parameter(ones(1)); nn.init.constant_(weight, 1.6)
    num_features = 4
    weight = jnp.full((1,), 1.6, dtype=jnp.float32)
    # `var` buffer exists in the module but is unused in forward.
    var = jnp.zeros((num_features,), dtype=jnp.float32)  # noqa: F841

    # Small NCHW input consistent with a conv feature map.
    x = jax.random.normal(key, (2, num_features, 16, 16), dtype=jnp.float32)

    y = scale_forward(x, weight)
    y = jax.block_until_ready(y)

    # Sanity check against the reference semantics.
    expected = x * weight[0]
    assert y.shape == x.shape and y.dtype == x.dtype
    assert jnp.allclose(y, expected, atol=1e-6, rtol=1e-6)

    print("KERNEL_OK")
</pallas_src>

<mosaic_0001>
module attributes {stable_mosaic.version = 11 : i64} {
  func.func @_scale_kernel(%arg0: i32, %arg1: memref<1xf32, #tpu.memory_space<smem>>, %arg2: memref<1x2048xf32, #tpu.memory_space<vmem>>, %arg3: memref<1x2048xf32, #tpu.memory_space<vmem>>) attributes {dimension_semantics = [#tpu.dimension_semantics<parallel>], iteration_bounds = array<i64: 1>, scalar_prefetch = 0 : i64, scratch_operands = 0 : i64, tpu.core_type = #tpu.core_type<tc>, window_params = [{transform_indices = @transform_0, window_bounds = array<i64: 1>}, {transform_indices = @transform_1, window_bounds = array<i64: 1, 2048>}, {transform_indices = @transform_2, window_bounds = array<i64: 1, 2048>}]} {
    %c0 = arith.constant 0 : index
    %0 = memref.load %arg1[%c0] : memref<1xf32, #tpu.memory_space<smem>>
    %c0_0 = arith.constant 0 : index
    %c0_1 = arith.constant 0 : index
    %1 = vector.load %arg2[%c0_0, %c0_1] : memref<1x2048xf32, #tpu.memory_space<vmem>>, vector<1x2048xf32>
    %2 = vector.broadcast %0 : f32 to vector<1x2048xf32>
    %3 = arith.mulf %1, %2 : vector<1x2048xf32>
    %c0_2 = arith.constant 0 : index
    %c0_3 = arith.constant 0 : index
    %4 = vector.load %arg3[%c0_2, %c0_3] : memref<1x2048xf32, #tpu.memory_space<vmem>>, vector<1x2048xf32>
    tpu.vector_store %arg3[%c0_2, %c0_3], %3 {strides = array<i32>} : memref<1x2048xf32, #tpu.memory_space<vmem>>, vector<1x2048xf32>,
    return
  }
  func.func @transform_0(%arg0: i32) -> i32 {
    %c0_i32 = arith.constant 0 : i32
    %c0_i32_0 = arith.constant 0 : i32
    return %c0_i32 : i32
  }
  func.func @transform_1(%arg0: i32) -> (i32, i32) {
    %c0_i32 = arith.constant 0 : i32
    %c0_i32_0 = arith.constant 0 : i32
    return %arg0, %c0_i32 : i32, i32
  }
  func.func @transform_2(%arg0: i32) -> (i32, i32) {
    %c0_i32 = arith.constant 0 : i32
    %c0_i32_0 = arith.constant 0 : i32
    return %arg0, %c0_i32 : i32, i32
  }
}

</mosaic_0001>

<llo_original>
// kernel: tpu_custom_call.1
$region0: #{tpu_custom_call.1}
  #allocation0 [shape = 'u32[]', space=smem, size = 0x4, offset = 0x4, fixed_abs, tag = 'smem constant byte address 0x4 - core index']
  #allocation1 [shape = 'u32[72,128]{1,0:T(1,128)}', space=vmem, size = 0x9000, scoped, tag = 'internal scratch']
  #allocation2 [shape = 'f32[1]{0:T(128)S(6)}', space=smem, size = 0x200, scoped, tag = 'scoped memory for tpu_custom_call.1']
  %s0 = inlined_call_operand.<no memory space> [shape: f32[1], index: 0, kind: input, shape index: {}]
  %s1 = inlined_call_operand.hbm [shape: f32[1,2048], index: 1, kind: input, shape index: {}]
  %s2 = inlined_call_operand.hbm [shape: f32[1,2048], index: 2, kind: output, shape index: {}]
  %s3 = sld [smem:[#allocation0]]
  $region22: #{tpu_custom_call.1} parent=0
    _
  %s5 = ssub.s32 1, %s3
  %s6 = scalar_select 0, %s5, %s3
  %7 = sst [smem:[#allocation2]] %s0
  $region1: #{tpu_custom_call.1} parent=0
    #allocation3 [shape = 'u8[8192]{0}', space=vmem, size = 0x2000, scoped, tag = 'input window, operand 1, single buffered']
    #allocation4 [shape = 's32[1]{0}', space=sflag, size = 0x4, scoped, tag = 'scoped memory for tpu_custom_call.1']
    #allocation5 [shape = 's32[1]{0}', space=sflag, size = 0x4, scoped, tag = 'scoped memory for tpu_custom_call.1']
    #allocation6 [shape = 'u8[8192]{0}', space=vmem, size = 0x2000, scoped, tag = 'output window, operand 0, single buffered']
    %8 = vsyncpa [#allocation4], 0
    %9 = vsyncpa [#allocation5], 0
    // Predicated region
    $region2: #{tpu_custom_call.1} parent=1 // pred_check
      _
    $region3: #{tpu_custom_call.1} parent=1 // pred_check_branch
      %11 = sbr.rel (0) target = $region5
    $region4: #{tpu_custom_call.1} parent=1 // pred_region
      _
    $region5: #{tpu_custom_call.1} parent=1 // pred_fallthru
      _
    // Predicated region
    $region6: #{tpu_custom_call.1} parent=1 // pred_check
      _
    $region7: #{tpu_custom_call.1} parent=1 // pred_check_branch
      %13 = sbr.rel (0) target = $region9
    $region8: #{tpu_custom_call.1} parent=1 // pred_region
      %15 = vsyncadd [#allocation4], 0
      %s17 = sshll.u32 %s1, 4
      %s18 = int_to_ptr.hbm [resolvable:$true] %s17
      %s19 = sshll.u32 [#allocation3], 4
      %s20 = int_to_ptr.vmem [resolvable:$true] %s19
      %22 = dma.hbm_to_vmem [thread:$0]  %s18, 256, %s20, [#allocation4]
    $region9: #{tpu_custom_call.1} parent=1 // pred_fallthru
      _
    // Predicated region
    $region10: #{tpu_custom_call.1} parent=1 // pred_check
      _
    $region11: #{tpu_custom_call.1} parent=1 // pred_check_branch
      %24 = sbr.rel (0) target = $region13
    $region12: #{tpu_custom_call.1} parent=1 // pred_region
      %26 = dma.done [#allocation4], 256
    $region13: #{tpu_custom_call.1} parent=1 // pred_fallthru
      _
    %s27 = sld [smem:[#allocation2]]
    %v28 = vld [vmem:[#allocation3] sm:$0xff]
    %v29 = vld [vmem:[#allocation3 + $0x8] sm:$0xff]
    %v30 = vstv %s27
    %v31 = vmul.f32 %v28, %v30
    %v32 = vmul.f32 %v29, %v30
    %33 = vst [vmem:[#allocation6] sm:$0xff] %v31
    %34 = vst [vmem:[#allocation6 + $0x8] sm:$0xff] %v32
    // Predicated region
    $region14: #{tpu_custom_call.1} parent=1 // pred_check
      _
    $region15: #{tpu_custom_call.1} parent=1 // pred_check_branch
      %36 = sbr.rel (0) target = $region17
    $region16: #{tpu_custom_call.1} parent=1 // pred_region
      %38 = vsyncadd [#allocation5], 0
      %s40 = sshll.u32 [#allocation6], 4
      %s41 = int_to_ptr.vmem [resolvable:$true] %s40
      %s42 = sshll.u32 %s2, 4
      %s43 = int_to_ptr.hbm [resolvable:$true] %s42
      %45 = dma.vmem_to_hbm [thread:$0]  %s41, 256, %s43, [#allocation5]
    $region17: #{tpu_custom_call.1} parent=1 // pred_fallthru
      _
    // Predicated region
    $region18: #{tpu_custom_call.1} parent=1 // pred_check
      _
    $region19: #{tpu_custom_call.1} parent=1 // pred_check_branch
      %47 = sbr.rel (0) target = $region21
    $region20: #{tpu_custom_call.1} parent=1 // pred_region
      %49 = dma.done [#allocation5], 256
    $region21: #{tpu_custom_call.1} parent=1 // pred_fallthru
      _
    %50 = vsyncpa [#allocation4], 1
    %51 = vsyncpa [#allocation5], 1

</llo_original>
